<compile_context>
chip_gen: v7x
topology: tpu7x:2x2x1
jax: 0.10.0
libtpu: 0.0.40
codegen_flags: <defaults>
</compile_context>

<pallas_src>
import functools

import jax
import jax.numpy as jnp
import numpy as np
from jax.experimental import pallas as pl
from jax.experimental.pallas import tpu as pltpu


def _rbf_kan_fused_kernel(*refs, grid_scaled, inv_h):
    """refs = (x_ref, w0_ref, ..., wL_ref, o_ref); each w_l is (D, I_l, O_l) in VMEM."""
    x_ref, o_ref = refs[0], refs[-1]
    w_refs = refs[1:-1]

    act = x_ref[...].astype(jnp.float32)                        # (TB, I0)
    for w_ref in w_refs:
        num_grids = w_ref.shape[0]
        t = act * inv_h                                         # hoisted out of d-loop
        # One contiguous exp over the whole (D, TB, I) slab -> single EUP stream.
        diff = jnp.stack([t - g for g in grid_scaled], axis=0)  # (D, TB, I)
        basis = jnp.exp(-(diff * diff))                         # (D, TB, I)
        # D small MXU dots accumulated in f32 (MXU has slack; EUP is the binding unit).
        acc = jnp.dot(basis[0], w_ref[0], preferred_element_type=jnp.float32)
        for d in range(1, num_grids):
            acc = acc + jnp.dot(basis[d], w_ref[d],
                                preferred_element_type=jnp.float32)
        act = acc                                               # (TB, O_l), stays on-chip
    o_ref[...] = act.astype(o_ref.dtype)


def rbf_kan_forward(x, weights, grid_min=-2.0, grid_max=2.0, num_grids=5,
                    block_batch=512):
    """x: (B, I0) f32. weights: list of (num_grids, I_l, O_l) f32 (kernel layout)."""
    B, I0 = x.shape
    O_last = weights[-1].shape[-1]
    h = (grid_max - grid_min) / (num_grids - 1)
    inv_h = 1.0 / h
    grid_pts = np.linspace(grid_min, grid_max, num_grids).astype(np.float32)
    grid_scaled = tuple(float(g) * inv_h for g in grid_pts)     # baked-in constants

    # Batch tiling: whole batch in one block when small; otherwise tile and pipeline.
    TB = B if B <= block_batch else block_batch
    grid = (pl.cdiv(B, TB),)

    kernel = functools.partial(_rbf_kan_fused_kernel,
                               grid_scaled=grid_scaled, inv_h=inv_h)

    in_specs = [pl.BlockSpec((TB, I0), lambda b: (b, 0))]
    for w in weights:
        # Full-array weight blocks, constant index_map -> resident across the grid.
        in_specs.append(pl.BlockSpec(w.shape, lambda b: (0, 0, 0)))
    out_specs = pl.BlockSpec((TB, O_last), lambda b: (b, 0))

    return pl.pallas_call(
        kernel,
        out_shape=jax.ShapeDtypeStruct((B, O_last), jnp.float32),
        grid=grid,
        in_specs=in_specs,
        out_specs=out_specs,
        compiler_params=pltpu.CompilerParams(
            dimension_semantics=("parallel",)),   # shards batch tiles across TCs on v7x
    )(x, *weights)


def init_rbf_kan_params(key, layers, num_grids=5, spline_weight_init_scale=0.1):
    """Deterministic synthetic weights, stored directly in kernel layout (D, I, O)."""
    weights = []
    for in_dim, out_dim in zip(layers[:-1], layers[1:]):
        key, sub = jax.random.split(key)
        w = (spline_weight_init_scale
             * jax.random.normal(sub, (num_grids, in_dim, out_dim), jnp.float32))
        weights.append(w)
    return weights


def rbf_kan_reference(x, weights, grid_min=-2.0, grid_max=2.0, num_grids=5):
    """Pure-JAX reference mirroring the PyTorch forward (basis -> einsum per layer)."""
    grid = jnp.asarray(np.linspace(grid_min, grid_max, num_grids).astype(np.float32))
    h = (grid_max - grid_min) / (num_grids - 1)
    for w in weights:
        basis = jnp.exp(-jnp.square((x[..., None] - grid) / h))   # (B, I, D)
        x = jnp.einsum("bid,dio->bo", basis, w)                   # weights are (D, I, O)
    return x


if __name__ == "__main__":
    # Matches RBFKAN(layers=[16, 32, 8], degree=5) -> num_grids = 5.
    layers = [16, 32, 8]
    grid_min, grid_max, num_grids = -2.0, 2.0, 5
    batch = 2

    key = jax.random.PRNGKey(0)
    key, kx = jax.random.split(key)
    x = jax.random.normal(kx, (batch, layers[0]), jnp.float32)

    weights = init_rbf_kan_params(key, layers, num_grids)

    out = rbf_kan_forward(x, weights, grid_min, grid_max, num_grids)
    out = jax.block_until_ready(out)

    ref = rbf_kan_reference(x, weights, grid_min, grid_max, num_grids)
    np.testing.assert_allclose(np.asarray(out), np.asarray(ref), rtol=1e-5, atol=1e-5)

    print("KERNEL_OK")
</pallas_src>

<mosaic_0001>
module attributes {stable_mosaic.version = 11 : i64} {
  func.func @_rbf_kan_fused_kernel(%arg0: i32, %arg1: memref<2x16xf32, #tpu.memory_space<vmem>>, %arg2: memref<5x16x32xf32, #tpu.memory_space<vmem>>, %arg3: memref<5x32x8xf32, #tpu.memory_space<vmem>>, %arg4: memref<2x8xf32, #tpu.memory_space<vmem>>) attributes {dimension_semantics = [#tpu.dimension_semantics<parallel>], iteration_bounds = array<i64: 1>, scalar_prefetch = 0 : i64, scratch_operands = 0 : i64, tpu.core_type = #tpu.core_type<tc>, window_params = [{transform_indices = @transform_0, window_bounds = array<i64: 2, 16>}, {pipeline_mode = #tpu.pipeline_mode<synchronous>, transform_indices = @transform_1, window_bounds = array<i64: 5, 16, 32>}, {pipeline_mode = #tpu.pipeline_mode<synchronous>, transform_indices = @transform_2, window_bounds = array<i64: 5, 32, 8>}, {transform_indices = @transform_3, window_bounds = array<i64: 2, 8>}]} {
    %c0 = arith.constant 0 : index
    %c0_0 = arith.constant 0 : index
    %0 = vector.load %arg1[%c0, %c0_0] : memref<2x16xf32, #tpu.memory_space<vmem>>, vector<2x16xf32>
    %cst = arith.constant 1.000000e+00 : f32
    %1 = vector.broadcast %cst : f32 to vector<2x16xf32>
    %2 = arith.mulf %0, %1 : vector<2x16xf32>
    %cst_1 = arith.constant -2.000000e+00 : f32
    %3 = vector.broadcast %cst_1 : f32 to vector<2x16xf32>
    %4 = arith.subf %2, %3 : vector<2x16xf32>
    %cst_2 = arith.constant -1.000000e+00 : f32
    %5 = vector.broadcast %cst_2 : f32 to vector<2x16xf32>
    %6 = arith.subf %2, %5 : vector<2x16xf32>
    %cst_3 = arith.constant 0.000000e+00 : f32
    %7 = vector.broadcast %cst_3 : f32 to vector<2x16xf32>
    %8 = arith.subf %2, %7 : vector<2x16xf32>
    %cst_4 = arith.constant 1.000000e+00 : f32
    %9 = vector.broadcast %cst_4 : f32 to vector<2x16xf32>
    %10 = arith.subf %2, %9 : vector<2x16xf32>
    %cst_5 = arith.constant 2.000000e+00 : f32
    %11 = vector.broadcast %cst_5 : f32 to vector<2x16xf32>
    %12 = arith.subf %2, %11 : vector<2x16xf32>
    %13 = vector.shape_cast %4 : vector<2x16xf32> to vector<1x2x16xf32>
    %14 = vector.shape_cast %6 : vector<2x16xf32> to vector<1x2x16xf32>
    %15 = vector.shape_cast %8 : vector<2x16xf32> to vector<1x2x16xf32>
    %16 = vector.shape_cast %10 : vector<2x16xf32> to vector<1x2x16xf32>
    %17 = vector.shape_cast %12 : vector<2x16xf32> to vector<1x2x16xf32>
    %18 = tpu.concatenate %13, %14, %15, %16, %17 in 0 : vector<1x2x16xf32>, vector<1x2x16xf32>, vector<1x2x16xf32>, vector<1x2x16xf32>, vector<1x2x16xf32> -> vector<5x2x16xf32>
    %19 = arith.mulf %18, %18 : vector<5x2x16xf32>
    %cst_6 = arith.constant 0.000000e+00 : f32
    %20 = vector.broadcast %cst_6 : f32 to vector<5x2x16xf32>
    %21 = arith.subf %20, %19 : vector<5x2x16xf32>
    %22 = math.exp %21 : vector<5x2x16xf32>
    %23 = vector.extract_strided_slice %22 {offsets = [0, 0, 0], sizes = [1, 2, 16], strides = [1, 1, 1]} : vector<5x2x16xf32> to vector<1x2x16xf32>
    %24 = vector.shape_cast %23 : vector<1x2x16xf32> to vector<2x16xf32>
    %c0_7 = arith.constant 0 : index
    %c0_8 = arith.constant 0 : index
    %c0_9 = arith.constant 0 : index
    %25 = vector.load %arg2[%c0_7, %c0_8, %c0_9] : memref<5x16x32xf32, #tpu.memory_space<vmem>>, vector<1x16x32xf32>
    %26 = vector.shape_cast %25 : vector<1x16x32xf32> to vector<16x32xf32>
    %cst_10 = arith.constant dense<0.000000e+00> : vector<2x32xf32>
    %27 = tpu.matmul %24, %26, %cst_10 {dimension_numbers = #tpu.dot_dimension_numbers<[1], [0], [0], [1], [0, 0, 1, 1], [], []>} : vector<2x16xf32>, vector<16x32xf32>, vector<2x32xf32> -> vector<2x32xf32>
    %28 = vector.extract_strided_slice %22 {offsets = [1, 0, 0], sizes = [1, 2, 16], strides = [1, 1, 1]} : vector<5x2x16xf32> to vector<1x2x16xf32>
    %29 = vector.shape_cast %28 : vector<1x2x16xf32> to vector<2x16xf32>
    %c1 = arith.constant 1 : index
    %c0_11 = arith.constant 0 : index
    %c0_12 = arith.constant 0 : index
    %30 = vector.load %arg2[%c1, %c0_11, %c0_12] : memref<5x16x32xf32, #tpu.memory_space<vmem>>, vector<1x16x32xf32>
    %31 = vector.shape_cast %30 : vector<1x16x32xf32> to vector<16x32xf32>
    %cst_13 = arith.constant dense<0.000000e+00> : vector<2x32xf32>
    %32 = tpu.matmul %29, %31, %cst_13 {dimension_numbers = #tpu.dot_dimension_numbers<[1], [0], [0], [1], [0, 0, 1, 1], [], []>} : vector<2x16xf32>, vector<16x32xf32>, vector<2x32xf32> -> vector<2x32xf32>
    %33 = arith.addf %27, %32 : vector<2x32xf32>
    %34 = vector.extract_strided_slice %22 {offsets = [2, 0, 0], sizes = [1, 2, 16], strides = [1, 1, 1]} : vector<5x2x16xf32> to vector<1x2x16xf32>
    %35 = vector.shape_cast %34 : vector<1x2x16xf32> to vector<2x16xf32>
    %c2 = arith.constant 2 : index
    %c0_14 = arith.constant 0 : index
    %c0_15 = arith.constant 0 : index
    %36 = vector.load %arg2[%c2, %c0_14, %c0_15] : memref<5x16x32xf32, #tpu.memory_space<vmem>>, vector<1x16x32xf32>
    %37 = vector.shape_cast %36 : vector<1x16x32xf32> to vector<16x32xf32>
    %cst_16 = arith.constant dense<0.000000e+00> : vector<2x32xf32>
    %38 = tpu.matmul %35, %37, %cst_16 {dimension_numbers = #tpu.dot_dimension_numbers<[1], [0], [0], [1], [0, 0, 1, 1], [], []>} : vector<2x16xf32>, vector<16x32xf32>, vector<2x32xf32> -> vector<2x32xf32>
    %39 = arith.addf %33, %38 : vector<2x32xf32>
    %40 = vector.extract_strided_slice %22 {offsets = [3, 0, 0], sizes = [1, 2, 16], strides = [1, 1, 1]} : vector<5x2x16xf32> to vector<1x2x16xf32>
    %41 = vector.shape_cast %40 : vector<1x2x16xf32> to vector<2x16xf32>
    %c3 = arith.constant 3 : index
    %c0_17 = arith.constant 0 : index
    %c0_18 = arith.constant 0 : index
    %42 = vector.load %arg2[%c3, %c0_17, %c0_18] : memref<5x16x32xf32, #tpu.memory_space<vmem>>, vector<1x16x32xf32>
    %43 = vector.shape_cast %42 : vector<1x16x32xf32> to vector<16x32xf32>
    %cst_19 = arith.constant dense<0.000000e+00> : vector<2x32xf32>
    %44 = tpu.matmul %41, %43, %cst_19 {dimension_numbers = #tpu.dot_dimension_numbers<[1], [0], [0], [1], [0, 0, 1, 1], [], []>} : vector<2x16xf32>, vector<16x32xf32>, vector<2x32xf32> -> vector<2x32xf32>
    %45 = arith.addf %39, %44 : vector<2x32xf32>
    %46 = vector.extract_strided_slice %22 {offsets = [4, 0, 0], sizes = [1, 2, 16], strides = [1, 1, 1]} : vector<5x2x16xf32> to vector<1x2x16xf32>
    %47 = vector.shape_cast %46 : vector<1x2x16xf32> to vector<2x16xf32>
    %c4 = arith.constant 4 : index
    %c0_20 = arith.constant 0 : index
    %c0_21 = arith.constant 0 : index
    %48 = vector.load %arg2[%c4, %c0_20, %c0_21] : memref<5x16x32xf32, #tpu.memory_space<vmem>>, vector<1x16x32xf32>
    %49 = vector.shape_cast %48 : vector<1x16x32xf32> to vector<16x32xf32>
    %cst_22 = arith.constant dense<0.000000e+00> : vector<2x32xf32>
    %50 = tpu.matmul %47, %49, %cst_22 {dimension_numbers = #tpu.dot_dimension_numbers<[1], [0], [0], [1], [0, 0, 1, 1], [], []>} : vector<2x16xf32>, vector<16x32xf32>, vector<2x32xf32> -> vector<2x32xf32>
    %51 = arith.addf %45, %50 : vector<2x32xf32>
    %cst_23 = arith.constant 1.000000e+00 : f32
    %52 = vector.broadcast %cst_23 : f32 to vector<2x32xf32>
    %53 = arith.mulf %51, %52 : vector<2x32xf32>
    %cst_24 = arith.constant -2.000000e+00 : f32
    %54 = vector.broadcast %cst_24 : f32 to vector<2x32xf32>
    %55 = arith.subf %53, %54 : vector<2x32xf32>
    %cst_25 = arith.constant -1.000000e+00 : f32
    %56 = vector.broadcast %cst_25 : f32 to vector<2x32xf32>
    %57 = arith.subf %53, %56 : vector<2x32xf32>
    %cst_26 = arith.constant 0.000000e+00 : f32
    %58 = vector.broadcast %cst_26 : f32 to vector<2x32xf32>
    %59 = arith.subf %53, %58 : vector<2x32xf32>
    %cst_27 = arith.constant 1.000000e+00 : f32
    %60 = vector.broadcast %cst_27 : f32 to vector<2x32xf32>
    %61 = arith.subf %53, %60 : vector<2x32xf32>
    %cst_28 = arith.constant 2.000000e+00 : f32
    %62 = vector.broadcast %cst_28 : f32 to vector<2x32xf32>
    %63 = arith.subf %53, %62 : vector<2x32xf32>
    %64 = vector.shape_cast %55 : vector<2x32xf32> to vector<1x2x32xf32>
    %65 = vector.shape_cast %57 : vector<2x32xf32> to vector<1x2x32xf32>
    %66 = vector.shape_cast %59 : vector<2x32xf32> to vector<1x2x32xf32>
    %67 = vector.shape_cast %61 : vector<2x32xf32> to vector<1x2x32xf32>
    %68 = vector.shape_cast %63 : vector<2x32xf32> to vector<1x2x32xf32>
    %69 = tpu.concatenate %64, %65, %66, %67, %68 in 0 : vector<1x2x32xf32>, vector<1x2x32xf32>, vector<1x2x32xf32>, vector<1x2x32xf32>, vector<1x2x32xf32> -> vector<5x2x32xf32>
    %70 = arith.mulf %69, %69 : vector<5x2x32xf32>
    %cst_29 = arith.constant 0.000000e+00 : f32
    %71 = vector.broadcast %cst_29 : f32 to vector<5x2x32xf32>
    %72 = arith.subf %71, %70 : vector<5x2x32xf32>
    %73 = math.exp %72 : vector<5x2x32xf32>
    %74 = vector.extract_strided_slice %73 {offsets = [0, 0, 0], sizes = [1, 2, 32], strides = [1, 1, 1]} : vector<5x2x32xf32> to vector<1x2x32xf32>
    %75 = vector.shape_cast %74 : vector<1x2x32xf32> to vector<2x32xf32>
    %c0_30 = arith.constant 0 : index
    %c0_31 = arith.constant 0 : index
    %c0_32 = arith.constant 0 : index
    %76 = vector.load %arg3[%c0_30, %c0_31, %c0_32] : memref<5x32x8xf32, #tpu.memory_space<vmem>>, vector<1x32x8xf32>
    %77 = vector.shape_cast %76 : vector<1x32x8xf32> to vector<32x8xf32>
    %cst_33 = arith.constant dense<0.000000e+00> : vector<2x8xf32>
    %78 = tpu.matmul %75, %77, %cst_33 {dimension_numbers = #tpu.dot_dimension_numbers<[1], [0], [0], [1], [0, 0, 1, 1], [], []>} : vector<2x32xf32>, vector<32x8xf32>, vector<2x8xf32> -> vector<2x8xf32>
    %79 = vector.extract_strided_slice %73 {offsets = [1, 0, 0], sizes = [1, 2, 32], strides = [1, 1, 1]} : vector<5x2x32xf32> to vector<1x2x32xf32>
    %80 = vector.shape_cast %79 : vector<1x2x32xf32> to vector<2x32xf32>
    %c1_34 = arith.constant 1 : index
    %c0_35 = arith.constant 0 : index
    %c0_36 = arith.constant 0 : index
    %81 = vector.load %arg3[%c1_34, %c0_35, %c0_36] : memref<5x32x8xf32, #tpu.memory_space<vmem>>, vector<1x32x8xf32>
    %82 = vector.shape_cast %81 : vector<1x32x8xf32> to vector<32x8xf32>
    %cst_37 = arith.constant dense<0.000000e+00> : vector<2x8xf32>
    %83 = tpu.matmul %80, %82, %cst_37 {dimension_numbers = #tpu.dot_dimension_numbers<[1], [0], [0], [1], [0, 0, 1, 1], [], []>} : vector<2x32xf32>, vector<32x8xf32>, vector<2x8xf32> -> vector<2x8xf32>
    %84 = arith.addf %78, %83 : vector<2x8xf32>
    %85 = vector.extract_strided_slice %73 {offsets = [2, 0, 0], sizes = [1, 2, 32], strides = [1, 1, 1]} : vector<5x2x32xf32> to vector<1x2x32xf32>
    %86 = vector.shape_cast %85 : vector<1x2x32xf32> to vector<2x32xf32>
    %c2_38 = arith.constant 2 : index
    %c0_39 = arith.constant 0 : index
    %c0_40 = arith.constant 0 : index
    %87 = vector.load %arg3[%c2_38, %c0_39, %c0_40] : memref<5x32x8xf32, #tpu.memory_space<vmem>>, vector<1x32x8xf32>
    %88 = vector.shape_cast %87 : vector<1x32x8xf32> to vector<32x8xf32>
    %cst_41 = arith.constant dense<0.000000e+00> : vector<2x8xf32>
    %89 = tpu.matmul %86, %88, %cst_41 {dimension_numbers = #tpu.dot_dimension_numbers<[1], [0], [0], [1], [0, 0, 1, 1], [], []>} : vector<2x32xf32>, vector<32x8xf32>, vector<2x8xf32> -> vector<2x8xf32>
    %90 = arith.addf %84, %89 : vector<2x8xf32>
    %91 = vector.extract_strided_slice %73 {offsets = [3, 0, 0], sizes = [1, 2, 32], strides = [1, 1, 1]} : vector<5x2x32xf32> to vector<1x2x32xf32>
    %92 = vector.shape_cast %91 : vector<1x2x32xf32> to vector<2x32xf32>
    %c3_42 = arith.constant 3 : index
    %c0_43 = arith.constant 0 : index
    %c0_44 = arith.constant 0 : index
    %93 = vector.load %arg3[%c3_42, %c0_43, %c0_44] : memref<5x32x8xf32, #tpu.memory_space<vmem>>, vector<1x32x8xf32>
    %94 = vector.shape_cast %93 : vector<1x32x8xf32> to vector<32x8xf32>
    %cst_45 = arith.constant dense<0.000000e+00> : vector<2x8xf32>
    %95 = tpu.matmul %92, %94, %cst_45 {dimension_numbers = #tpu.dot_dimension_numbers<[1], [0], [0], [1], [0, 0, 1, 1], [], []>} : vector<2x32xf32>, vector<32x8xf32>, vector<2x8xf32> -> vector<2x8xf32>
    %96 = arith.addf %90, %95 : vector<2x8xf32>
    %97 = vector.extract_strided_slice %73 {offsets = [4, 0, 0], sizes = [1, 2, 32], strides = [1, 1, 1]} : vector<5x2x32xf32> to vector<1x2x32xf32>
    %98 = vector.shape_cast %97 : vector<1x2x32xf32> to vector<2x32xf32>
    %c4_46 = arith.constant 4 : index
    %c0_47 = arith.constant 0 : index
    %c0_48 = arith.constant 0 : index
    %99 = vector.load %arg3[%c4_46, %c0_47, %c0_48] : memref<5x32x8xf32, #tpu.memory_space<vmem>>, vector<1x32x8xf32>
    %100 = vector.shape_cast %99 : vector<1x32x8xf32> to vector<32x8xf32>
    %cst_49 = arith.constant dense<0.000000e+00> : vector<2x8xf32>
    %101 = tpu.matmul %98, %100, %cst_49 {dimension_numbers = #tpu.dot_dimension_numbers<[1], [0], [0], [1], [0, 0, 1, 1], [], []>} : vector<2x32xf32>, vector<32x8xf32>, vector<2x8xf32> -> vector<2x8xf32>
    %102 = arith.addf %96, %101 : vector<2x8xf32>
    %c0_50 = arith.constant 0 : index
    %c0_51 = arith.constant 0 : index
    %103 = vector.load %arg4[%c0_50, %c0_51] : memref<2x8xf32, #tpu.memory_space<vmem>>, vector<2x8xf32>
    tpu.vector_store %arg4[%c0_50, %c0_51], %102 {strides = array<i32>} : memref<2x8xf32, #tpu.memory_space<vmem>>, vector<2x8xf32>,
    return
  }
  func.func @transform_0(%arg0: i32) -> (i32, i32) {
    %c0_i32 = arith.constant 0 : i32
    %c0_i32_0 = arith.constant 0 : i32
    return %arg0, %c0_i32 : i32, i32
  }
  func.func @transform_1(%arg0: i32) -> (i32, i32, i32) {
    %c0_i32 = arith.constant 0 : i32
    %c0_i32_0 = arith.constant 0 : i32
    %c0_i32_1 = arith.constant 0 : i32
    %c0_i32_2 = arith.constant 0 : i32
    return %c0_i32, %c0_i32_0, %c0_i32_1 : i32, i32, i32
  }
  func.func @transform_2(%arg0: i32) -> (i32, i32, i32) {
    %c0_i32 = arith.constant 0 : i32
    %c0_i32_0 = arith.constant 0 : i32
    %c0_i32_1 = arith.constant 0 : i32
    %c0_i32_2 = arith.constant 0 : i32
    return %c0_i32, %c0_i32_0, %c0_i32_1 : i32, i32, i32
  }
  func.func @transform_3(%arg0: i32) -> (i32, i32) {
    %c0_i32 = arith.constant 0 : i32
    %c0_i32_0 = arith.constant 0 : i32
    return %arg0, %c0_i32 : i32, i32
  }
}

</mosaic_0001>

<llo_original>
// kernel: tpu_custom_call.1
$region0: #{tpu_custom_call.1}
  #allocation0 [shape = 'u32[]', space=smem, size = 0x4, offset = 0x4, fixed_abs, tag = 'smem constant byte address 0x4 - core index']
  #allocation1 [shape = 'u32[144,128]{1,0:T(1,128)}', space=vmem, size = 0x12000, scoped, tag = 'internal scratch']
  %s0 = inlined_call_operand.vmem [shape: f32[2,16], index: 0, kind: input, shape index: {}]
  %s1 = inlined_call_operand.vmem [shape: f32[5,16,32], index: 1, kind: input, shape index: {}]
  %s2 = inlined_call_operand.vmem [shape: f32[5,32,8], index: 2, kind: input, shape index: {}]
  %s3 = inlined_call_operand.hbm [shape: f32[2,8], index: 3, kind: output, shape index: {}]
  %s4 = sld [smem:[#allocation0]]
  $region22: #{tpu_custom_call.1} parent=0
    _
  %s6 = ssub.s32 1, %s4
  %s7 = scalar_select 0, %s6, %s4
  $region1: #{tpu_custom_call.1} parent=0
    #allocation2 [shape = 'u8[1024]{0}', space=vmem, size = 0x400, scoped, tag = 'output window, operand 0, single buffered']
    #allocation3 [shape = 's32[1]{0}', space=sflag, size = 0x4, scoped, tag = 'scoped memory for tpu_custom_call.1']
    %8 = vsyncpa [#allocation3], 0
    // Predicated region
    $region2: #{tpu_custom_call.1} parent=1 // pred_check
      _
    $region3: #{tpu_custom_call.1} parent=1 // pred_check_branch
      %10 = sbr.rel (0) target = $region5
    $region4: #{tpu_custom_call.1} parent=1 // pred_region
      _
    $region5: #{tpu_custom_call.1} parent=1 // pred_fallthru
      _
    // Predicated region
    $region6: #{tpu_custom_call.1} parent=1 // pred_check
      _
    $region7: #{tpu_custom_call.1} parent=1 // pred_check_branch
      %12 = sbr.rel (0) target = $region9
    $region8: #{tpu_custom_call.1} parent=1 // pred_region
      _
    $region9: #{tpu_custom_call.1} parent=1 // pred_fallthru
      _
    // Predicated region
    $region10: #{tpu_custom_call.1} parent=1 // pred_check
      _
    $region11: #{tpu_custom_call.1} parent=1 // pred_check_branch
      %14 = sbr.rel (0) target = $region13
    $region12: #{tpu_custom_call.1} parent=1 // pred_region
      _
    $region13: #{tpu_custom_call.1} parent=1 // pred_fallthru
      _
    %v15 = vld [vmem:[%s0] sm:$0x3]
    %v16 = vsub.f32 %v15, -2.0
    %v17 = vsub.f32 %v15, -1.0
    %v18 = vsub.f32 %v15, 1.0
    %v19 = vsub.f32 %v15, 2.0
    %v20 = vmul.f32 %v16, %v16
    %v21 = vmul.f32 %v17, %v17
    %v22 = vmul.f32 %v15, %v15
    %v23 = vmul.f32 %v18, %v18
    %v24 = vmul.f32 %v19, %v19
    %v25 = vsub.f32 0.0, %v20
    %v26 = vsub.f32 0.0, %v21
    %v27 = vsub.f32 0.0, %v22
    %v28 = vsub.f32 0.0, %v23
    %v29 = vsub.f32 0.0, %v24
    %v30 = vmul.f32 %v25, 1.442695
    %v31 = vpow.pop %v30
    %v32 = vmul.f32 %v26, 1.442695
    %v33 = vpow.pop %v32
    %v34 = vmul.f32 %v27, 1.442695
    %v35 = vpow.pop %v34
    %v36 = vmul.f32 %v28, 1.442695
    %v37 = vpow.pop %v36
    %v38 = vmul.f32 %v29, 1.442695
    %v39 = vpow.pop %v38
    %v40 = vld [vmem:[%s1] sm:$0xff]
    %v41 = vld [vmem:[%s1 + $0x8] sm:$0xff]
    %s42 = scalar_lea.vmem %s1, 16
    %v43 = vld [vmem:[%s42] sm:$0xff]
    %v44 = vld [vmem:[%s42 + $0x8] sm:$0xff]
    %vm45 = vcmask 130048
    %v47 = vsel %vm45, %v33, 0
    %49 = vmatprep.subr.mxu0 0.0
    %50 = vmatpush1.msra.mxu0 %v43
    %51 = vmatprep.subr.mxu0 0.0
    %52 = vmatpush1.msra.mxu0 %v44
    %53 = vmatprep.subr.mxu0 0.0
    %54 = vmatpush1.msra.mxu0 0.0
    %55 = vmatprep.subr.mxu0 0.0
    %56 = vmatpush1.msra.mxu0 0.0
    %57 = vmatprep.subr.mxu0 0.0
    %58 = vmatpush1.msra.mxu0 0.0
    %59 = vmatprep.subr.mxu0 0.0
    %60 = vmatpush1.msra.mxu0 0.0
    %61 = vmatprep.subr.mxu0 0.0
    %62 = vmatpush1.msra.mxu0 0.0
    %63 = vmatprep.subr.mxu0 0.0
    %64 = vmatpush1.msra.mxu0 0.0
    %65 = vmatprep.subr.mxu0 0.0
    %66 = vmatpush1.msra.mxu0 0.0
    %67 = vmatprep.subr.mxu0 0.0
    %68 = vmatpush1.msra.mxu0 0.0
    %69 = vmatprep.subr.mxu0 0.0
    %70 = vmatpush1.msra.mxu0 0.0
    %71 = vmatprep.subr.mxu0 0.0
    %72 = vmatpush1.msra.mxu0 0.0
    %73 = vmatprep.subr.mxu0 0.0
    %74 = vmatpush1.msra.mxu0 0.0
    %75 = vmatprep.subr.mxu0 0.0
    %76 = vmatpush1.msra.mxu0 0.0
    %77 = vmatprep.subr.mxu0 0.0
    %78 = vmatpush1.msra.mxu0 0.0
    %79 = vmatprep.subr.mxu0 0.0
    %80 = vmatpush1.msra.mxu0 0.0
    %81 = vmatprep.subr.mxu0 0.0
    %82 = vmatpush1.msra.mxu0 0.0
    %83 = vmatprep.subr.mxu0 0.0
    %84 = vmatpush1.msra.mxu0 0.0
    %85 = vmatprep.subr.mxu0 0.0
    %86 = vmatpush1.msra.mxu0 0.0
    %87 = vmatprep.subr.mxu0 0.0
    %88 = vmatpush1.msra.mxu0 0.0
    %89 = vmatprep.subr.mxu0 0.0
    %90 = vmatpush1.msra.mxu0 0.0
    %91 = vmatprep.subr.mxu0 0.0
    %92 = vmatpush1.msra.mxu0 0.0
    %93 = vmatprep.subr.mxu0 0.0
    %94 = vmatpush1.msra.mxu0 0.0
    %95 = vmatprep.subr.mxu0 0.0
    %96 = vmatpush1.msra.mxu0 0.0
    %97 = vmatprep.subr.mxu0 0.0
    %98 = vmatpush1.msra.mxu0 0.0
    %99 = vmatprep.subr.mxu0 0.0
    %100 = vmatpush1.msra.mxu0 0.0
    %101 = vmatprep.subr.mxu0 0.0
    %102 = vmatpush1.msra.mxu0 0.0
    %103 = vmatprep.subr.mxu0 0.0
    %104 = vmatpush1.msra.mxu0 0.0
    %105 = vmatprep.subr.mxu0 0.0
    %106 = vmatpush1.msra.mxu0 0.0
    %107 = vmatprep.subr.mxu0 0.0
    %108 = vmatpush1.msra.mxu0 0.0
    %109 = vmatprep.subr.mxu0 0.0
    %110 = vmatpush1.msra.mxu0 0.0
    %111 = vmatprep.subr.mxu0 0.0
    %112 = vmatpush1.msra.mxu0 0.0
    %113 = vmatprep.mubr.f32.mxu0 0.0
    %114 = vmatmul.mubr.f32.gmra.mrb[0].mxu0 %v47
    %v115 = vpop.f32.mrb[0].mxu0
    %v116 = vadd.f32 0.0, %v115
    %v117 = vpop.f32.mrb[0].mxu0
    %118 = vdwg.mxu0
    %v120 = vsel %vm45, %v31, 0
    %122 = vmatprep.subr.mxu0 0.0
    %123 = vmatpush1.msra.mxu0 %v40
    %124 = vmatprep.subr.mxu0 0.0
    %125 = vmatpush1.msra.mxu0 %v41
    %126 = vmatprep.subr.mxu0 0.0
    %127 = vmatpush1.msra.mxu0 0.0
    %128 = vmatprep.subr.mxu0 0.0
    %129 = vmatpush1.msra.mxu0 0.0
    %130 = vmatprep.subr.mxu0 0.0
    %131 = vmatpush1.msra.mxu0 0.0
    %132 = vmatprep.subr.mxu0 0.0
    %133 = vmatpush1.msra.mxu0 0.0
    %134 = vmatprep.subr.mxu0 0.0
    %135 = vmatpush1.msra.mxu0 0.0
    %136 = vmatprep.subr.mxu0 0.0
    %137 = vmatpush1.msra.mxu0 0.0
    %138 = vmatprep.subr.mxu0 0.0
    %139 = vmatpush1.msra.mxu0 0.0
    %140 = vmatprep.subr.mxu0 0.0
    %141 = vmatpush1.msra.mxu0 0.0
    %142 = vmatprep.subr.mxu0 0.0
    %143 = vmatpush1.msra.mxu0 0.0
    %144 = vmatprep.subr.mxu0 0.0
    %145 = vmatpush1.msra.mxu0 0.0
    %146 = vmatprep.subr.mxu0 0.0
    %147 = vmatpush1.msra.mxu0 0.0
    %148 = vmatprep.subr.mxu0 0.0
    %149 = vmatpush1.msra.mxu0 0.0
    %150 = vmatprep.subr.mxu0 0.0
    %151 = vmatpush1.msra.mxu0 0.0
    %152 = vmatprep.subr.mxu0 0.0
    %153 = vmatpush1.msra.mxu0 0.0
    %154 = vmatprep.subr.mxu0 0.0
    %155 = vmatpush1.msra.mxu0 0.0
    %156 = vmatprep.subr.mxu0 0.0
    %157 = vmatpush1.msra.mxu0 0.0
    %158 = vmatprep.subr.mxu0 0.0
    %159 = vmatpush1.msra.mxu0 0.0
    %160 = vmatprep.subr.mxu0 0.0
    %161 = vmatpush1.msra.mxu0 0.0
    %162 = vmatprep.subr.mxu0 0.0
    %163 = vmatpush1.msra.mxu0 0.0
    %164 = vmatprep.subr.mxu0 0.0
    %165 = vmatpush1.msra.mxu0 0.0
    %166 = vmatprep.subr.mxu0 0.0
    %167 = vmatpush1.msra.mxu0 0.0
    %168 = vmatprep.subr.mxu0 0.0
    %169 = vmatpush1.msra.mxu0 0.0
    %170 = vmatprep.subr.mxu0 0.0
    %171 = vmatpush1.msra.mxu0 0.0
    %172 = vmatprep.subr.mxu0 0.0
    %173 = vmatpush1.msra.mxu0 0.0
    %174 = vmatprep.subr.mxu0 0.0
    %175 = vmatpush1.msra.mxu0 0.0
    %176 = vmatprep.subr.mxu0 0.0
    %177 = vmatpush1.msra.mxu0 0.0
    %178 = vmatprep.subr.mxu0 0.0
    %179 = vmatpush1.msra.mxu0 0.0
    %180 = vmatprep.subr.mxu0 0.0
    %181 = vmatpush1.msra.mxu0 0.0
    %182 = vmatprep.subr.mxu0 0.0
    %183 = vmatpush1.msra.mxu0 0.0
    %184 = vmatprep.subr.mxu0 0.0
    %185 = vmatpush1.msra.mxu0 0.0
    %186 = vmatprep.mubr.f32.mxu0 0.0
    %187 = vmatmul.mubr.f32.gmra.mrb[0].mxu0 %v120
    %v188 = vpop.f32.mrb[0].mxu0
    %v189 = vadd.f32 %v116, %v188
    %v190 = vpop.f32.mrb[0].mxu0
    %191 = vdwg.mxu0
    %s192 = scalar_lea.vmem %s1, 32
    %v193 = vld [vmem:[%s192] sm:$0xff]
    %v194 = vld [vmem:[%s192 + $0x8] sm:$0xff]
    %v196 = vsel %vm45, %v35, 0
    %198 = vmatprep.subr.mxu0 0.0
    %199 = vmatpush1.msra.mxu0 %v193
    %200 = vmatprep.subr.mxu0 0.0
    %201 = vmatpush1.msra.mxu0 %v194
    %202 = vmatprep.subr.mxu0 0.0
    %203 = vmatpush1.msra.mxu0 0.0
    %204 = vmatprep.subr.mxu0 0.0
    %205 = vmatpush1.msra.mxu0 0.0
    %206 = vmatprep.subr.mxu0 0.0
    %207 = vmatpush1.msra.mxu0 0.0
    %208 = vmatprep.subr.mxu0 0.0
    %209 = vmatpush1.msra.mxu0 0.0
    %210 = vmatprep.subr.mxu0 0.0
    %211 = vmatpush1.msra.mxu0 0.0
    %212 = vmatprep.subr.mxu0 0.0
    %213 = vmatpush1.msra.mxu0 0.0
    %214 = vmatprep.subr.mxu0 0.0
    %215 = vmatpush1.msra.mxu0 0.0
    %216 = vmatprep.subr.mxu0 0.0
    %217 = vmatpush1.msra.mxu0 0.0
    %218 = vmatprep.subr.mxu0 0.0
    %219 = vmatpush1.msra.mxu0 0.0
    %220 = vmatprep.subr.mxu0 0.0
    %221 = vmatpush1.msra.mxu0 0.0
    %222 = vmatprep.subr.mxu0 0.0
    %223 = vmatpush1.msra.mxu0 0.0
    %224 = vmatprep.subr.mxu0 0.0
    %225 = vmatpush1.msra.mxu0 0.0
    %226 = vmatprep.subr.mxu0 0.0
    %227 = vmatpush1.msra.mxu0 0.0
    %228 = vmatprep.subr.mxu0 0.0
    %229 = vmatpush1.msra.mxu0 0.0
    %230 = vmatprep.subr.mxu0 0.0
    %231 = vmatpush1.msra.mxu0 0.0
    %232 = vmatprep.subr.mxu0 0.0
    %233 = vmatpush1.msra.mxu0 0.0
    %234 = vmatprep.subr.mxu0 0.0
    %235 = vmatpush1.msra.mxu0 0.0
    %236 = vmatprep.subr.mxu0 0.0
    %237 = vmatpush1.msra.mxu0 0.0
    %238 = vmatprep.subr.mxu0 0.0
    %239 = vmatpush1.msra.mxu0 0.0
    %240 = vmatprep.subr.mxu0 0.0
    %241 = vmatpush1.msra.mxu0 0.0
    %242 = vmatprep.subr.mxu0 0.0
    %243 = vmatpush1.msra.mxu0 0.0
    %244 = vmatprep.subr.mxu0 0.0
    %245 = vmatpush1.msra.mxu0 0.0
    %246 = vmatprep.subr.mxu0 0.0
    %247 = vmatpush1.msra.mxu0 0.0
    %248 = vmatprep.subr.mxu0 0.0
    %249 = vmatpush1.msra.mxu0 0.0
    %250 = vmatprep.subr.mxu0 0.0
    %251 = vmatpush1.msra.mxu0 0.0
    %252 = vmatprep.subr.mxu0 0.0
    %253 = vmatpush1.msra.mxu0 0.0
    %254 = vmatprep.subr.mxu0 0.0
    %255 = vmatpush1.msra.mxu0 0.0
    %256 = vmatprep.subr.mxu0 0.0
    %257 = vmatpush1.msra.mxu0 0.0
    %258 = vmatprep.subr.mxu0 0.0
    %259 = vmatpush1.msra.mxu0 0.0
    %260 = vmatprep.subr.mxu0 0.0
    %261 = vmatpush1.msra.mxu0 0.0
    %262 = vmatprep.mubr.f32.mxu0 0.0
    %263 = vmatmul.mubr.f32.gmra.mrb[0].mxu0 %v196
    %v264 = vpop.f32.mrb[0].mxu0
    %v265 = vadd.f32 0.0, %v264
    %v266 = vpop.f32.mrb[0].mxu0
    %267 = vdwg.mxu0
    %v268 = vadd.f32 %v189, %v265
    %s269 = scalar_lea.vmem %s1, 48
    %v270 = vld [vmem:[%s269] sm:$0xff]
    %v271 = vld [vmem:[%s269 + $0x8] sm:$0xff]
    %v273 = vsel %vm45, %v37, 0
    %275 = vmatprep.subr.mxu0 0.0
    %276 = vmatpush1.msra.mxu0 %v270
    %277 = vmatprep.subr.mxu0 0.0
    %278 = vmatpush1.msra.mxu0 %v271
    %279 = vmatprep.subr.mxu0 0.0
    %280 = vmatpush1.msra.mxu0 0.0
    %281 = vmatprep.subr.mxu0 0.0
    %282 = vmatpush1.msra.mxu0 0.0
    %283 = vmatprep.subr.mxu0 0.0
    %284 = vmatpush1.msra.mxu0 0.0
    %285 = vmatprep.subr.mxu0 0.0
    %286 = vmatpush1.msra.mxu0 0.0
    %287 = vmatprep.subr.mxu0 0.0
    %288 = vmatpush1.msra.mxu0 0.0
    %289 = vmatprep.subr.mxu0 0.0
    %290 = vmatpush1.msra.mxu0 0.0
    %291 = vmatprep.subr.mxu0 0.0
    %292 = vmatpush1.msra.mxu0 0.0
    %293 = vmatprep.subr.mxu0 0.0
    %294 = vmatpush1.msra.mxu0 0.0
    %295 = vmatprep.subr.mxu0 0.0
    %296 = vmatpush1.msra.mxu0 0.0
    %297 = vmatprep.subr.mxu0 0.0
    %298 = vmatpush1.msra.mxu0 0.0
    %299 = vmatprep.subr.mxu0 0.0
    %300 = vmatpush1.msra.mxu0 0.0
    %301 = vmatprep.subr.mxu0 0.0
    %302 = vmatpush1.msra.mxu0 0.0
    %303 = vmatprep.subr.mxu0 0.0
    %304 = vmatpush1.msra.mxu0 0.0
    %305 = vmatprep.subr.mxu0 0.0
    %306 = vmatpush1.msra.mxu0 0.0
    %307 = vmatprep.subr.mxu0 0.0
    %308 = vmatpush1.msra.mxu0 0.0
    %309 = vmatprep.subr.mxu0 0.0
    %310 = vmatpush1.msra.mxu0 0.0
    %311 = vmatprep.subr.mxu0 0.0
    %312 = vmatpush1.msra.mxu0 0.0
    %313 = vmatprep.subr.mxu0 0.0
    %314 = vmatpush1.msra.mxu0 0.0
    %315 = vmatprep.subr.mxu0 0.0
    %316 = vmatpush1.msra.mxu0 0.0
    %317 = vmatprep.subr.mxu0 0.0
    %318 = vmatpush1.msra.mxu0 0.0
    %319 = vmatprep.subr.mxu0 0.0
    %320 = vmatpush1.msra.mxu0 0.0
    %321 = vmatprep.subr.mxu0 0.0
    %322 = vmatpush1.msra.mxu0 0.0
    %323 = vmatprep.subr.mxu0 0.0
    %324 = vmatpush1.msra.mxu0 0.0
    %325 = vmatprep.subr.mxu0 0.0
    %326 = vmatpush1.msra.mxu0 0.0
    %327 = vmatprep.subr.mxu0 0.0
    %328 = vmatpush1.msra.mxu0 0.0
    %329 = vmatprep.subr.mxu0 0.0
    %330 = vmatpush1.msra.mxu0 0.0
    %331 = vmatprep.subr.mxu0 0.0
    %332 = vmatpush1.msra.mxu0 0.0
    %333 = vmatprep.subr.mxu0 0.0
    %334 = vmatpush1.msra.mxu0 0.0
    %335 = vmatprep.subr.mxu0 0.0
    %336 = vmatpush1.msra.mxu0 0.0
    %337 = vmatprep.subr.mxu0 0.0
    %338 = vmatpush1.msra.mxu0 0.0
    %339 = vmatprep.mubr.f32.mxu0 0.0
    %340 = vmatmul.mubr.f32.gmra.mrb[0].mxu0 %v273
    %v341 = vpop.f32.mrb[0].mxu0
    %v342 = vadd.f32 0.0, %v341
    %v343 = vpop.f32.mrb[0].mxu0
    %344 = vdwg.mxu0
    %v345 = vadd.f32 %v268, %v342
    %s346 = scalar_lea.vmem %s1, 64
    %v347 = vld [vmem:[%s346] sm:$0xff]
    %v348 = vld [vmem:[%s346 + $0x8] sm:$0xff]
    %v350 = vsel %vm45, %v39, 0
    %352 = vmatprep.subr.mxu0 0.0
    %353 = vmatpush1.msra.mxu0 %v347
    %354 = vmatprep.subr.mxu0 0.0
    %355 = vmatpush1.msra.mxu0 %v348
    %356 = vmatprep.subr.mxu0 0.0
    %357 = vmatpush1.msra.mxu0 0.0
    %358 = vmatprep.subr.mxu0 0.0
    %359 = vmatpush1.msra.mxu0 0.0
    %360 = vmatprep.subr.mxu0 0.0
    %361 = vmatpush1.msra.mxu0 0.0
    %362 = vmatprep.subr.mxu0 0.0
    %363 = vmatpush1.msra.mxu0 0.0
    %364 = vmatprep.subr.mxu0 0.0
    %365 = vmatpush1.msra.mxu0 0.0
    %366 = vmatprep.subr.mxu0 0.0
    %367 = vmatpush1.msra.mxu0 0.0
    %368 = vmatprep.subr.mxu0 0.0
    %369 = vmatpush1.msra.mxu0 0.0
    %370 = vmatprep.subr.mxu0 0.0
    %371 = vmatpush1.msra.mxu0 0.0
    %372 = vmatprep.subr.mxu0 0.0
    %373 = vmatpush1.msra.mxu0 0.0
    %374 = vmatprep.subr.mxu0 0.0
    %375 = vmatpush1.msra.mxu0 0.0
    %376 = vmatprep.subr.mxu0 0.0
    %377 = vmatpush1.msra.mxu0 0.0
    %378 = vmatprep.subr.mxu0 0.0
    %379 = vmatpush1.msra.mxu0 0.0
    %380 = vmatprep.subr.mxu0 0.0
    %381 = vmatpush1.msra.mxu0 0.0
    %382 = vmatprep.subr.mxu0 0.0
    %383 = vmatpush1.msra.mxu0 0.0
    %384 = vmatprep.subr.mxu0 0.0
    %385 = vmatpush1.msra.mxu0 0.0
    %386 = vmatprep.subr.mxu0 0.0
    %387 = vmatpush1.msra.mxu0 0.0
    %388 = vmatprep.subr.mxu0 0.0
    %389 = vmatpush1.msra.mxu0 0.0
    %390 = vmatprep.subr.mxu0 0.0
    %391 = vmatpush1.msra.mxu0 0.0
    %392 = vmatprep.subr.mxu0 0.0
    %393 = vmatpush1.msra.mxu0 0.0
    %394 = vmatprep.subr.mxu0 0.0
    %395 = vmatpush1.msra.mxu0 0.0
    %396 = vmatprep.subr.mxu0 0.0
    %397 = vmatpush1.msra.mxu0 0.0
    %398 = vmatprep.subr.mxu0 0.0
    %399 = vmatpush1.msra.mxu0 0.0
    %400 = vmatprep.subr.mxu0 0.0
    %401 = vmatpush1.msra.mxu0 0.0
    %402 = vmatprep.subr.mxu0 0.0
    %403 = vmatpush1.msra.mxu0 0.0
    %404 = vmatprep.subr.mxu0 0.0
    %405 = vmatpush1.msra.mxu0 0.0
    %406 = vmatprep.subr.mxu0 0.0
    %407 = vmatpush1.msra.mxu0 0.0
    %408 = vmatprep.subr.mxu0 0.0
    %409 = vmatpush1.msra.mxu0 0.0
    %410 = vmatprep.subr.mxu0 0.0
    %411 = vmatpush1.msra.mxu0 0.0
    %412 = vmatprep.subr.mxu0 0.0
    %413 = vmatpush1.msra.mxu0 0.0
    %414 = vmatprep.subr.mxu0 0.0
    %415 = vmatpush1.msra.mxu0 0.0
    %416 = vmatprep.mubr.f32.mxu0 0.0
    %417 = vmatmul.mubr.f32.gmra.mrb[0].mxu0 %v350
    %v418 = vpop.f32.mrb[0].mxu0
    %v419 = vadd.f32 0.0, %v418
    %v420 = vpop.f32.mrb[0].mxu0
    %421 = vdwg.mxu0
    %v422 = vadd.f32 %v345, %v419
    %v423 = vsub.f32 %v422, -2.0
    %v424 = vsub.f32 %v422, -1.0
    %v425 = vsub.f32 %v422, 1.0
    %v426 = vsub.f32 %v422, 2.0
    %v427 = vmul.f32 %v423, %v423
    %v428 = vmul.f32 %v424, %v424
    %v429 = vmul.f32 %v422, %v422
    %v430 = vmul.f32 %v425, %v425
    %v431 = vmul.f32 %v426, %v426
    %v432 = vsub.f32 0.0, %v427
    %v433 = vsub.f32 0.0, %v428
    %v434 = vsub.f32 0.0, %v429
    %v435 = vsub.f32 0.0, %v430
    %v436 = vsub.f32 0.0, %v431
    %v437 = vmul.f32 %v432, 1.442695
    %v438 = vpow.pop %v437
    %v439 = vmul.f32 %v433, 1.442695
    %v440 = vpow.pop %v439
    %v441 = vmul.f32 %v434, 1.442695
    %v442 = vpow.pop %v441
    %v443 = vmul.f32 %v435, 1.442695
    %v444 = vpow.pop %v443
    %v445 = vmul.f32 %v436, 1.442695
    %v446 = vpow.pop %v445
    %v447 = vld [vmem:[%s2] sm:$0xff]
    %v448 = vld [vmem:[%s2 + $0x8] sm:$0xff]
    %v449 = vld [vmem:[%s2 + $0x10] sm:$0xff]
    %v450 = vld [vmem:[%s2 + $0x18] sm:$0xff]
    %s451 = scalar_lea.vmem %s2, 32
    %v452 = vld [vmem:[%s451] sm:$0xff]
    %v453 = vld [vmem:[%s451 + $0x8] sm:$0xff]
    %v454 = vld [vmem:[%s451 + $0x10] sm:$0xff]
    %v455 = vld [vmem:[%s451 + $0x18] sm:$0xff]
    %vm456 = vcmask 261120
    %v458 = vsel %vm456, %v440, 0
    %460 = vmatprep.subr.mxu0 0.0
    %461 = vmatpush1.msra.mxu0 %v452
    %462 = vmatprep.subr.mxu0 0.0
    %463 = vmatpush1.msra.mxu0 %v453
    %464 = vmatprep.subr.mxu0 0.0
    %465 = vmatpush1.msra.mxu0 %v454
    %466 = vmatprep.subr.mxu0 0.0
    %467 = vmatpush1.msra.mxu0 %v455
    %468 = vmatprep.subr.mxu0 0.0
    %469 = vmatpush1.msra.mxu0 0.0
    %470 = vmatprep.subr.mxu0 0.0
    %471 = vmatpush1.msra.mxu0 0.0
    %472 = vmatprep.subr.mxu0 0.0
    %473 = vmatpush1.msra.mxu0 0.0
    %474 = vmatprep.subr.mxu0 0.0
    %475 = vmatpush1.msra.mxu0 0.0
    %476 = vmatprep.subr.mxu0 0.0
    %477 = vmatpush1.msra.mxu0 0.0
    %478 = vmatprep.subr.mxu0 0.0
    %479 = vmatpush1.msra.mxu0 0.0
    %480 = vmatprep.subr.mxu0 0.0
    %481 = vmatpush1.msra.mxu0 0.0
    %482 = vmatprep.subr.mxu0 0.0
    %483 = vmatpush1.msra.mxu0 0.0
    %484 = vmatprep.subr.mxu0 0.0
    %485 = vmatpush1.msra.mxu0 0.0
    %486 = vmatprep.subr.mxu0 0.0
    %487 = vmatpush1.msra.mxu0 0.0
    %488 = vmatprep.subr.mxu0 0.0
    %489 = vmatpush1.msra.mxu0 0.0
    %490 = vmatprep.subr.mxu0 0.0
    %491 = vmatpush1.msra.mxu0 0.0
    %492 = vmatprep.subr.mxu0 0.0
    %493 = vmatpush1.msra.mxu0 0.0
    %494 = vmatprep.subr.mxu0 0.0
    %495 = vmatpush1.msra.mxu0 0.0
    %496 = vmatprep.subr.mxu0 0.0
    %497 = vmatpush1.msra.mxu0 0.0
    %498 = vmatprep.subr.mxu0 0.0
    %499 = vmatpush1.msra.mxu0 0.0
    %500 = vmatprep.subr.mxu0 0.0
    %501 = vmatpush1.msra.mxu0 0.0
    %502 = vmatprep.subr.mxu0 0.0
    %503 = vmatpush1.msra.mxu0 0.0
    %504 = vmatprep.subr.mxu0 0.0
    %505 = vmatpush1.msra.mxu0 0.0
    %506 = vmatprep.subr.mxu0 0.0
    %507 = vmatpush1.msra.mxu0 0.0
    %508 = vmatprep.subr.mxu0 0.0
    %509 = vmatpush1.msra.mxu0 0.0
    %510 = vmatprep.subr.mxu0 0.0
    %511 = vmatpush1.msra.mxu0 0.0
    %512 = vmatprep.subr.mxu0 0.0
    %513 = vmatpush1.msra.mxu0 0.0
    %514 = vmatprep.subr.mxu0 0.0
    %515 = vmatpush1.msra.mxu0 0.0
    %516 = vmatprep.subr.mxu0 0.0
    %517 = vmatpush1.msra.mxu0 0.0
    %518 = vmatprep.subr.mxu0 0.0
    %519 = vmatpush1.msra.mxu0 0.0
    %520 = vmatprep.subr.mxu0 0.0
    %521 = vmatpush1.msra.mxu0 0.0
    %522 = vmatprep.subr.mxu0 0.0
    %523 = vmatpush1.msra.mxu0 0.0
    %524 = vmatprep.mubr.f32.mxu0 0.0
    %525 = vmatmul.mubr.f32.gmra.mrb[0].mxu0 %v458
    %v526 = vpop.f32.mrb[0].mxu0
    %v527 = vadd.f32 0.0, %v526
    %v528 = vpop.f32.mrb[0].mxu0
    %529 = vdwg.mxu0
    %v531 = vsel %vm456, %v438, 0
    %533 = vmatprep.subr.mxu0 0.0
    %534 = vmatpush1.msra.mxu0 %v447
    %535 = vmatprep.subr.mxu0 0.0
    %536 = vmatpush1.msra.mxu0 %v448
    %537 = vmatprep.subr.mxu0 0.0
    %538 = vmatpush1.msra.mxu0 %v449
    %539 = vmatprep.subr.mxu0 0.0
    %540 = vmatpush1.msra.mxu0 %v450
    %541 = vmatprep.subr.mxu0 0.0
    %542 = vmatpush1.msra.mxu0 0.0
    %543 = vmatprep.subr.mxu0 0.0
    %544 = vmatpush1.msra.mxu0 0.0
    %545 = vmatprep.subr.mxu0 0.0
    %546 = vmatpush1.msra.mxu0 0.0
    %547 = vmatprep.subr.mxu0 0.0
    %548 = vmatpush1.msra.mxu0 0.0
    %549 = vmatprep.subr.mxu0 0.0
    %550 = vmatpush1.msra.mxu0 0.0
    %551 = vmatprep.subr.mxu0 0.0
    %552 = vmatpush1.msra.mxu0 0.0
    %553 = vmatprep.subr.mxu0 0.0
    %554 = vmatpush1.msra.mxu0 0.0
    %555 = vmatprep.subr.mxu0 0.0
    %556 = vmatpush1.msra.mxu0 0.0
    %557 = vmatprep.subr.mxu0 0.0
    %558 = vmatpush1.msra.mxu0 0.0
    %559 = vmatprep.subr.mxu0 0.0
    %560 = vmatpush1.msra.mxu0 0.0
    %561 = vmatprep.subr.mxu0 0.0
    %562 = vmatpush1.msra.mxu0 0.0
    %563 = vmatprep.subr.mxu0 0.0
    %564 = vmatpush1.msra.mxu0 0.0
    %565 = vmatprep.subr.mxu0 0.0
    %566 = vmatpush1.msra.mxu0 0.0
    %567 = vmatprep.subr.mxu0 0.0
    %568 = vmatpush1.msra.mxu0 0.0
    %569 = vmatprep.subr.mxu0 0.0
    %570 = vmatpush1.msra.mxu0 0.0
    %571 = vmatprep.subr.mxu0 0.0
    %572 = vmatpush1.msra.mxu0 0.0
    %573 = vmatprep.subr.mxu0 0.0
    %574 = vmatpush1.msra.mxu0 0.0
    %575 = vmatprep.subr.mxu0 0.0
    %576 = vmatpush1.msra.mxu0 0.0
    %577 = vmatprep.subr.mxu0 0.0
    %578 = vmatpush1.msra.mxu0 0.0
    %579 = vmatprep.subr.mxu0 0.0
    %580 = vmatpush1.msra.mxu0 0.0
    %581 = vmatprep.subr.mxu0 0.0
    %582 = vmatpush1.msra.mxu0 0.0
    %583 = vmatprep.subr.mxu0 0.0
    %584 = vmatpush1.msra.mxu0 0.0
    %585 = vmatprep.subr.mxu0 0.0
    %586 = vmatpush1.msra.mxu0 0.0
    %587 = vmatprep.subr.mxu0 0.0
    %588 = vmatpush1.msra.mxu0 0.0
    %589 = vmatprep.subr.mxu0 0.0
    %590 = vmatpush1.msra.mxu0 0.0
    %591 = vmatprep.subr.mxu0 0.0
    %592 = vmatpush1.msra.mxu0 0.0
    %593 = vmatprep.subr.mxu0 0.0
    %594 = vmatpush1.msra.mxu0 0.0
    %595 = vmatprep.subr.mxu0 0.0
    %596 = vmatpush1.msra.mxu0 0.0
    %597 = vmatprep.mubr.f32.mxu0 0.0
    %598 = vmatmul.mubr.f32.gmra.mrb[0].mxu0 %v531
    %v599 = vpop.f32.mrb[0].mxu0
    %v600 = vadd.f32 %v527, %v599
    %v601 = vpop.f32.mrb[0].mxu0
    %602 = vdwg.mxu0
    %s603 = scalar_lea.vmem %s2, 64
    %v604 = vld [vmem:[%s603] sm:$0xff]
    %v605 = vld [vmem:[%s603 + $0x8] sm:$0xff]
    %v606 = vld [vmem:[%s603 + $0x10] sm:$0xff]
    %v607 = vld [vmem:[%s603 + $0x18] sm:$0xff]
    %v609 = vsel %vm456, %v442, 0
    %611 = vmatprep.subr.mxu0 0.0
    %612 = vmatpush1.msra.mxu0 %v604
    %613 = vmatprep.subr.mxu0 0.0
    %614 = vmatpush1.msra.mxu0 %v605
    %615 = vmatprep.subr.mxu0 0.0
    %616 = vmatpush1.msra.mxu0 %v606
    %617 = vmatprep.subr.mxu0 0.0
    %618 = vmatpush1.msra.mxu0 %v607
    %619 = vmatprep.subr.mxu0 0.0
    %620 = vmatpush1.msra.mxu0 0.0
    %621 = vmatprep.subr.mxu0 0.0
    %622 = vmatpush1.msra.mxu0 0.0
    %623 = vmatprep.subr.mxu0 0.0
    %624 = vmatpush1.msra.mxu0 0.0
    %625 = vmatprep.subr.mxu0 0.0
    %626 = vmatpush1.msra.mxu0 0.0
    %627 = vmatprep.subr.mxu0 0.0
    %628 = vmatpush1.msra.mxu0 0.0
    %629 = vmatprep.subr.mxu0 0.0
    %630 = vmatpush1.msra.mxu0 0.0
    %631 = vmatprep.subr.mxu0 0.0
    %632 = vmatpush1.msra.mxu0 0.0
    %633 = vmatprep.subr.mxu0 0.0
    %634 = vmatpush1.msra.mxu0 0.0
    %635 = vmatprep.subr.mxu0 0.0
    %636 = vmatpush1.msra.mxu0 0.0
    %637 = vmatprep.subr.mxu0 0.0
    %638 = vmatpush1.msra.mxu0 0.0
    %639 = vmatprep.subr.mxu0 0.0
    %640 = vmatpush1.msra.mxu0 0.0
    %641 = vmatprep.subr.mxu0 0.0
    %642 = vmatpush1.msra.mxu0 0.0
    %643 = vmatprep.subr.mxu0 0.0
    %644 = vmatpush1.msra.mxu0 0.0
    %645 = vmatprep.subr.mxu0 0.0
    %646 = vmatpush1.msra.mxu0 0.0
    %647 = vmatprep.subr.mxu0 0.0
    %648 = vmatpush1.msra.mxu0 0.0
    %649 = vmatprep.subr.mxu0 0.0
    %650 = vmatpush1.msra.mxu0 0.0
    %651 = vmatprep.subr.mxu0 0.0
    %652 = vmatpush1.msra.mxu0 0.0
    %653 = vmatprep.subr.mxu0 0.0
    %654 = vmatpush1.msra.mxu0 0.0
    %655 = vmatprep.subr.mxu0 0.0
    %656 = vmatpush1.msra.mxu0 0.0
    %657 = vmatprep.subr.mxu0 0.0
    %658 = vmatpush1.msra.mxu0 0.0
    %659 = vmatprep.subr.mxu0 0.0
    %660 = vmatpush1.msra.mxu0 0.0
    %661 = vmatprep.subr.mxu0 0.0
    %662 = vmatpush1.msra.mxu0 0.0
    %663 = vmatprep.subr.mxu0 0.0
    %664 = vmatpush1.msra.mxu0 0.0
    %665 = vmatprep.subr.mxu0 0.0
    %666 = vmatpush1.msra.mxu0 0.0
    %667 = vmatprep.subr.mxu0 0.0
    %668 = vmatpush1.msra.mxu0 0.0
    %669 = vmatprep.subr.mxu0 0.0
    %670 = vmatpush1.msra.mxu0 0.0
    %671 = vmatprep.subr.mxu0 0.0
    %672 = vmatpush1.msra.mxu0 0.0
    %673 = vmatprep.subr.mxu0 0.0
    %674 = vmatpush1.msra.mxu0 0.0
    %675 = vmatprep.mubr.f32.mxu0 0.0
    %676 = vmatmul.mubr.f32.gmra.mrb[0].mxu0 %v609
    %v677 = vpop.f32.mrb[0].mxu0
    %v678 = vadd.f32 0.0, %v677
    %v679 = vpop.f32.mrb[0].mxu0
    %680 = vdwg.mxu0
    %v681 = vadd.f32 %v600, %v678
    %s682 = scalar_lea.vmem %s2, 96
    %v683 = vld [vmem:[%s682] sm:$0xff]
    %v684 = vld [vmem:[%s682 + $0x8] sm:$0xff]
    %v685 = vld [vmem:[%s682 + $0x10] sm:$0xff]
    %v686 = vld [vmem:[%s682 + $0x18] sm:$0xff]
    %v688 = vsel %vm456, %v444, 0
    %690 = vmatprep.subr.mxu0 0.0
    %691 = vmatpush1.msra.mxu0 %v683
    %692 = vmatprep.subr.mxu0 0.0
    %693 = vmatpush1.msra.mxu0 %v684
    %694 = vmatprep.subr.mxu0 0.0
    %695 = vmatpush1.msra.mxu0 %v685
    %696 = vmatprep.subr.mxu0 0.0
    %697 = vmatpush1.msra.mxu0 %v686
    %698 = vmatprep.subr.mxu0 0.0
    %699 = vmatpush1.msra.mxu0 0.0
    %700 = vmatprep.subr.mxu0 0.0
    %701 = vmatpush1.msra.mxu0 0.0
    %702 = vmatprep.subr.mxu0 0.0
    %703 = vmatpush1.msra.mxu0 0.0
    %704 = vmatprep.subr.mxu0 0.0
    %705 = vmatpush1.msra.mxu0 0.0
    %706 = vmatprep.subr.mxu0 0.0
    %707 = vmatpush1.msra.mxu0 0.0
    %708 = vmatprep.subr.mxu0 0.0
    %709 = vmatpush1.msra.mxu0 0.0
    %710 = vmatprep.subr.mxu0 0.0
    %711 = vmatpush1.msra.mxu0 0.0
    %712 = vmatprep.subr.mxu0 0.0
    %713 = vmatpush1.msra.mxu0 0.0
    %714 = vmatprep.subr.mxu0 0.0
    %715 = vmatpush1.msra.mxu0 0.0
    %716 = vmatprep.subr.mxu0 0.0
    %717 = vmatpush1.msra.mxu0 0.0
    %718 = vmatprep.subr.mxu0 0.0
    %719 = vmatpush1.msra.mxu0 0.0
    %720 = vmatprep.subr.mxu0 0.0
    %721 = vmatpush1.msra.mxu0 0.0
    %722 = vmatprep.subr.mxu0 0.0
    %723 = vmatpush1.msra.mxu0 0.0
    %724 = vmatprep.subr.mxu0 0.0
    %725 = vmatpush1.msra.mxu0 0.0
    %726 = vmatprep.subr.mxu0 0.0
    %727 = vmatpush1.msra.mxu0 0.0
    %728 = vmatprep.subr.mxu0 0.0
    %729 = vmatpush1.msra.mxu0 0.0
    %730 = vmatprep.subr.mxu0 0.0
    %731 = vmatpush1.msra.mxu0 0.0
    %732 = vmatprep.subr.mxu0 0.0
    %733 = vmatpush1.msra.mxu0 0.0
    %734 = vmatprep.subr.mxu0 0.0
    %735 = vmatpush1.msra.mxu0 0.0
    %736 = vmatprep.subr.mxu0 0.0
    %737 = vmatpush1.msra.mxu0 0.0
    %738 = vmatprep.subr.mxu0 0.0
    %739 = vmatpush1.msra.mxu0 0.0
    %740 = vmatprep.subr.mxu0 0.0
    %741 = vmatpush1.msra.mxu0 0.0
    %742 = vmatprep.subr.mxu0 0.0
    %743 = vmatpush1.msra.mxu0 0.0
    %744 = vmatprep.subr.mxu0 0.0
    %745 = vmatpush1.msra.mxu0 0.0
    %746 = vmatprep.subr.mxu0 0.0
    %747 = vmatpush1.msra.mxu0 0.0
    %748 = vmatprep.subr.mxu0 0.0
    %749 = vmatpush1.msra.mxu0 0.0
    %750 = vmatprep.subr.mxu0 0.0
    %751 = vmatpush1.msra.mxu0 0.0
    %752 = vmatprep.subr.mxu0 0.0
    %753 = vmatpush1.msra.mxu0 0.0
    %754 = vmatprep.mubr.f32.mxu0 0.0
    %755 = vmatmul.mubr.f32.gmra.mrb[0].mxu0 %v688
    %v756 = vpop.f32.mrb[0].mxu0
    %v757 = vadd.f32 0.0, %v756
    %v758 = vpop.f32.mrb[0].mxu0
    %759 = vdwg.mxu0
    %v760 = vadd.f32 %v681, %v757
    %s761 = scalar_lea.vmem %s2, 128
    %v762 = vld [vmem:[%s761] sm:$0xff]
    %v763 = vld [vmem:[%s761 + $0x8] sm:$0xff]
    %v764 = vld [vmem:[%s761 + $0x10] sm:$0xff]
    %v765 = vld [vmem:[%s761 + $0x18] sm:$0xff]
    %v767 = vsel %vm456, %v446, 0
    %769 = vmatprep.subr.mxu0 0.0
    %770 = vmatpush1.msra.mxu0 %v762
    %771 = vmatprep.subr.mxu0 0.0
    %772 = vmatpush1.msra.mxu0 %v763
    %773 = vmatprep.subr.mxu0 0.0
    %774 = vmatpush1.msra.mxu0 %v764
    %775 = vmatprep.subr.mxu0 0.0
    %776 = vmatpush1.msra.mxu0 %v765
    %777 = vmatprep.subr.mxu0 0.0
    %778 = vmatpush1.msra.mxu0 0.0
    %779 = vmatprep.subr.mxu0 0.0
    %780 = vmatpush1.msra.mxu0 0.0
    %781 = vmatprep.subr.mxu0 0.0
    %782 = vmatpush1.msra.mxu0 0.0
    %783 = vmatprep.subr.mxu0 0.0
    %784 = vmatpush1.msra.mxu0 0.0
    %785 = vmatprep.subr.mxu0 0.0
    %786 = vmatpush1.msra.mxu0 0.0
    %787 = vmatprep.subr.mxu0 0.0
    %788 = vmatpush1.msra.mxu0 0.0
    %789 = vmatprep.subr.mxu0 0.0
    %790 = vmatpush1.msra.mxu0 0.0
    %791 = vmatprep.subr.mxu0 0.0
    %792 = vmatpush1.msra.mxu0 0.0
    %793 = vmatprep.subr.mxu0 0.0
    %794 = vmatpush1.msra.mxu0 0.0
    %795 = vmatprep.subr.mxu0 0.0
    %796 = vmatpush1.msra.mxu0 0.0
    %797 = vmatprep.subr.mxu0 0.0
    %798 = vmatpush1.msra.mxu0 0.0
    %799 = vmatprep.subr.mxu0 0.0
    %800 = vmatpush1.msra.mxu0 0.0
    %801 = vmatprep.subr.mxu0 0.0
    %802 = vmatpush1.msra.mxu0 0.0
    %803 = vmatprep.subr.mxu0 0.0
    %804 = vmatpush1.msra.mxu0 0.0
    %805 = vmatprep.subr.mxu0 0.0
    %806 = vmatpush1.msra.mxu0 0.0
    %807 = vmatprep.subr.mxu0 0.0
    %808 = vmatpush1.msra.mxu0 0.0
    %809 = vmatprep.subr.mxu0 0.0
    %810 = vmatpush1.msra.mxu0 0.0
    %811 = vmatprep.subr.mxu0 0.0
    %812 = vmatpush1.msra.mxu0 0.0
    %813 = vmatprep.subr.mxu0 0.0
    %814 = vmatpush1.msra.mxu0 0.0
    %815 = vmatprep.subr.mxu0 0.0
    %816 = vmatpush1.msra.mxu0 0.0
    %817 = vmatprep.subr.mxu0 0.0
    %818 = vmatpush1.msra.mxu0 0.0
    %819 = vmatprep.subr.mxu0 0.0
    %820 = vmatpush1.msra.mxu0 0.0
    %821 = vmatprep.subr.mxu0 0.0
    %822 = vmatpush1.msra.mxu0 0.0
    %823 = vmatprep.subr.mxu0 0.0
    %824 = vmatpush1.msra.mxu0 0.0
    %825 = vmatprep.subr.mxu0 0.0
    %826 = vmatpush1.msra.mxu0 0.0
    %827 = vmatprep.subr.mxu0 0.0
    %828 = vmatpush1.msra.mxu0 0.0
    %829 = vmatprep.subr.mxu0 0.0
    %830 = vmatpush1.msra.mxu0 0.0
    %831 = vmatprep.subr.mxu0 0.0
    %832 = vmatpush1.msra.mxu0 0.0
    %833 = vmatprep.mubr.f32.mxu0 0.0
    %834 = vmatmul.mubr.f32.gmra.mrb[0].mxu0 %v767
    %v835 = vpop.f32.mrb[0].mxu0
    %v836 = vadd.f32 0.0, %v835
    %v837 = vpop.f32.mrb[0].mxu0
    %838 = vdwg.mxu0
    %v839 = vadd.f32 %v760, %v836
    %vm840 = vcmask 58368
    %841 = vst.msk [vmem:[#allocation2] sm:$0x3] %vm840, %v839
    // Predicated region
    $region14: #{tpu_custom_call.1} parent=1 // pred_check
      _
    $region15: #{tpu_custom_call.1} parent=1 // pred_check_branch
      %843 = sbr.rel (0) target = $region17
    $region16: #{tpu_custom_call.1} parent=1 // pred_region
      %s845 = ssub.s32 32, 32
      %846 = vsyncadd [#allocation3], %s845
      %s848 = sshll.u32 [#allocation2], 4
      %s849 = int_to_ptr.vmem [resolvable:$true] %s848
      %851 = dma.vmem_to_hbm [thread:$0]  %s849, 32, %s3, [#allocation3]
    $region17: #{tpu_custom_call.1} parent=1 // pred_fallthru
      _
    // Predicated region
    $region18: #{tpu_custom_call.1} parent=1 // pred_check
      _
    $region19: #{tpu_custom_call.1} parent=1 // pred_check_branch
      %853 = sbr.rel (0) target = $region21
    $region20: #{tpu_custom_call.1} parent=1 // pred_region
      %854 = dma.done [#allocation3], 32
    $region21: #{tpu_custom_call.1} parent=1 // pred_fallthru
      _
    %855 = vsyncpa [#allocation3], 1

</llo_original>
